<compile_context>
chip_gen: v6e
topology: v6e:2x2x1
jax: 0.10.0
libtpu: 0.0.40
codegen_flags: <defaults>
</compile_context>

<pallas_src>
import functools

import jax
import jax.numpy as jnp
import numpy as np
from jax.experimental import pallas as pl
from jax.experimental.pallas import tpu as pltpu


# ---------------------------------------------------------------------------
# Fused kernel.
#   tgt:   (bs, 1) int32         target ids
#   feats: (4*bs, D) f32         [hr; lr1; lr2; lr3] stacked along rows
#   w_hbm: (D, C) bf16 (in HBM)  linear head weight (manually DMA'd)
#   b:     (1, C) f32            linear head bias
#   out:   (1, 128) f32          [loss, loss_cls, loss_cls_lr1, loss_cls_lr2,
#                                 loss_cls_lr3, loss_dist, 0 ... 0]
# ---------------------------------------------------------------------------
def fused_learner_kernel(tgt_ref, feats_ref, w_hbm_ref, b_ref, out_ref,
                         w_vmem, w_sem, *, bs, lambda_dist):
    n = 4 * bs

    # Kick off the head-weight DMA now; the distance branch below does not
    # touch w, so the transfer is hidden behind that compute.
    w_copy = pltpu.make_async_copy(w_hbm_ref, w_vmem, w_sem)
    w_copy.start()

    reps = feats_ref[...]                         # (n, D) f32
    reps_bf = reps.astype(jnp.bfloat16)           # bf16 MXU operands

    # ---------------------- contrastive distance loss ---------------------
    # Gram on raw features; normalize afterwards (cos-sim is scale invariant).
    gram = jax.lax.dot_general(
        reps_bf, reps_bf, dimension_numbers=(((1,), (1,)), ((), ())),
        preferred_element_type=jnp.float32)       # (n, n) f32

    row = jax.lax.broadcasted_iota(jnp.int32, (n, n), 0)
    col = jax.lax.broadcasted_iota(jnp.int32, (n, n), 1)
    on_diag = row == col

    # squared norms = Gram diagonal (row- and column-oriented copies so no
    # explicit transpose is needed).
    gdiag = jnp.where(on_diag, gram, 0.0)
    sumsq_r = jnp.sum(gdiag, axis=1, keepdims=True)      # (n, 1)
    sumsq_c = jnp.sum(gdiag, axis=0, keepdims=True)      # (1, n)
    # clamp at eps^2 so the effective norm clamp matches torch
    # CosineSimilarity's eps=1e-8.
    inv_r = jax.lax.rsqrt(jnp.maximum(sumsq_r, 1e-16))
    inv_c = jax.lax.rsqrt(jnp.maximum(sumsq_c, 1e-16))
    sim = gram * inv_r * inv_c                            # (n, n)

    # same-identity pairs: (i - j) divisible by bs.
    d = row - col
    if bs & (bs - 1) == 0:                                # power-of-two bs
        same = (d & (bs - 1)) == 0
    else:
        same = jax.lax.rem(d, bs) == 0
    pos = same & jnp.logical_not(on_diag)
    neg = jnp.logical_not(same)

    # dist = 1 - sim  =>  hard_pos - hard_neg = max_neg(sim) - min_pos(sim).
    min_pos_sim = jnp.min(jnp.where(pos, sim, 1e30), axis=-1, keepdims=True)
    max_neg_sim = jnp.max(jnp.where(neg, sim, -1e30), axis=-1, keepdims=True)
    hinge = jnp.maximum(1.0 + max_neg_sim - min_pos_sim, 0.0)      # (n, 1)
    loss_dist = jnp.sum(hinge, axis=0, keepdims=True) * (1.0 / n)  # (1, 1)

    # ---------------- classification head + cross-entropy -----------------
    w_copy.wait()
    # One (4*bs, D) x (D, C) bf16 MXU matmul for all four groups.
    logits = (jnp.dot(reps_bf, w_vmem[...], preferred_element_type=jnp.float32)
              + b_ref[...])                                        # (n, C)
    c = logits.shape[-1]

    # numerically-stable log-sum-exp (reductions kept 2-D).
    m = jnp.max(logits, axis=-1, keepdims=True)                    # (n, 1)
    lse = m + jnp.log(jnp.sum(jnp.exp(logits - m), axis=-1, keepdims=True))

    # pick the target logit with an iota compare (no one-hot materialization).
    t = tgt_ref[...]                                               # (bs, 1)
    tgt4 = jnp.concatenate((t, t, t, t), axis=0)                   # (n, 1)
    cls_iota = jax.lax.broadcasted_iota(jnp.int32, (n, c), 1)
    # TODO(synk): torch's gather errors on out-of-range target ids; here they
    #             silently yield picked=0 — validate targets upstream.
    picked = jnp.sum(jnp.where(cls_iota == tgt4, logits, 0.0),
                     axis=-1, keepdims=True)                       # (n, 1)
    ce = lse - picked                                              # (n, 1)

    inv_bs = 1.0 / bs
    loss_cls = jnp.sum(ce[0 * bs:1 * bs], axis=0, keepdims=True) * inv_bs
    loss_cls_lr1 = jnp.sum(ce[1 * bs:2 * bs], axis=0, keepdims=True) * inv_bs
    loss_cls_lr2 = jnp.sum(ce[2 * bs:3 * bs], axis=0, keepdims=True) * inv_bs
    loss_cls_lr3 = jnp.sum(ce[3 * bs:4 * bs], axis=0, keepdims=True) * inv_bs

    total = ((loss_cls + loss_cls_lr1 + loss_cls_lr2 + loss_cls_lr3) * 0.25
             + lambda_dist * loss_dist)                            # (1, 1)

    # -------- single lane-dense output store (no masked scalar vst) -------
    width = out_ref.shape[-1]
    lane = jax.lax.broadcasted_iota(jnp.int32, (1, width), 1)
    outrow = jnp.zeros((1, width), jnp.float32)
    for k, v in enumerate((total, loss_cls, loss_cls_lr1, loss_cls_lr2,
                           loss_cls_lr3, loss_dist)):
        outrow = jnp.where(lane == k, v, outrow)
    out_ref[...] = outrow


# ---------------------------------------------------------------------------
# Forward: mirrors CreateLearner.forward() with args.multi=True and
# args.lambda_dist > 0.  One pallas_call total.
# Returns (loss, loss_cls, loss_cls_lr1, loss_cls_lr2, loss_cls_lr3, loss_dist).
# ---------------------------------------------------------------------------
@functools.partial(jax.jit, static_argnames=("bs", "lambda_dist"))
def learner_forward(feat_hr, feat_lr1, feat_lr2, feat_lr3, target,
                    head_w, head_b, *, bs, lambda_dist):
    # Stack the four feature groups into one (4*bs, D) block: one input DMA
    # instead of four, and no in-kernel sublane concat.
    feats = jnp.concatenate((feat_hr, feat_lr1, feat_lr2, feat_lr3), axis=0)
    tgt = target.reshape(bs, 1).astype(jnp.int32)
    # bf16 MXU operand; also halves the (largest) input transfer.
    w_bf = head_w.astype(jnp.bfloat16)

    d, c = head_w.shape
    kernel = functools.partial(fused_learner_kernel, bs=bs,
                               lambda_dist=lambda_dist)
    out = pl.pallas_call(
        kernel,
        out_shape=jax.ShapeDtypeStruct((1, 128), jnp.float32),
        in_specs=[
            pl.BlockSpec(memory_space=pltpu.MemorySpace.VMEM),   # target
            pl.BlockSpec(memory_space=pltpu.MemorySpace.VMEM),   # features
            pl.BlockSpec(memory_space=pl.ANY),                   # head_w (HBM)
            pl.BlockSpec(memory_space=pltpu.MemorySpace.VMEM),   # head_b
        ],
        out_specs=pl.BlockSpec(memory_space=pltpu.MemorySpace.VMEM),
        scratch_shapes=[
            pltpu.VMEM((d, c), jnp.bfloat16),    # head_w landing buffer
            pltpu.SemaphoreType.DMA,             # its DMA semaphore
        ],
    )(tgt, feats, w_bf, head_b)

    return (out[0, 0], out[0, 1], out[0, 2], out[0, 3], out[0, 4], out[0, 5])


# ---------------------------------------------------------------------------
# Pure numpy (float64) reference of the forward math, for correctness checks.
# ---------------------------------------------------------------------------
def reference_forward(feats, target, w, b, bs, lambda_dist):
    feats64 = [np.asarray(f, dtype=np.float64) for f in feats]
    w64 = np.asarray(w, dtype=np.float64)
    b64 = np.asarray(b, dtype=np.float64)
    tgt = np.asarray(target)

    def ce(feat):
        logits = feat @ w64 + b64
        m = logits.max(-1, keepdims=True)
        lse = m + np.log(np.exp(logits - m).sum(-1, keepdims=True))
        picked = logits[np.arange(len(tgt)), tgt][:, None]
        return float(np.mean(lse - picked))

    losses_cls = [ce(f) for f in feats64]

    reps = np.concatenate(feats64, axis=0)
    norm = np.maximum(np.linalg.norm(reps, axis=-1, keepdims=True), 1e-8)
    xn = reps / norm
    dist = 1.0 - xn @ xn.T

    diag = np.eye(bs)
    mask = np.hstack((diag, diag))
    mask = np.hstack((mask, mask))
    mask = np.vstack((mask, mask))
    mask = np.vstack((mask, mask))
    pos_mask = (mask - np.eye(4 * bs)) > 0.5
    neg_mask = (1 - mask) > 0.5

    hard_pos = np.max(np.where(pos_mask, dist, -np.inf), axis=-1)
    hard_neg = np.min(np.where(neg_mask, dist, np.inf), axis=-1)
    loss_dist = float(np.mean(np.maximum(1.0 + hard_pos - hard_neg, 0.0)))

    loss = sum(losses_cls) / 4.0 + lambda_dist * loss_dist
    return [loss] + losses_cls + [loss_dist]


if __name__ == "__main__":
    # Small, TPU-friendly shapes consistent with the module:
    #   bs = 8 (args.bs), feature_dim = 128 (args.feature_dim),
    #   class_num = 128, lambda_dist = 0.1.
    BS = 8
    FEATURE_DIM = 128
    CLASS_NUM = 128
    LAMBDA_DIST = 0.1

    key = jax.random.PRNGKey(0)
    k_hr, k_l1, k_l2, k_l3, k_t, k_w = jax.random.split(key, 6)

    # Backbone outputs (stand-ins for self.backbone(face_*)).
    feat_hr = jax.random.normal(k_hr, (BS, FEATURE_DIM), dtype=jnp.float32)
    feat_lr1 = jax.random.normal(k_l1, (BS, FEATURE_DIM), dtype=jnp.float32)
    feat_lr2 = jax.random.normal(k_l2, (BS, FEATURE_DIM), dtype=jnp.float32)
    feat_lr3 = jax.random.normal(k_l3, (BS, FEATURE_DIM), dtype=jnp.float32)
    target = jax.random.randint(k_t, (BS,), 0, CLASS_NUM, dtype=jnp.int32)

    # Deterministic head parameters (xavier-uniform style init, bias = 0),
    # matching weights_init() for a Linear layer.
    limit = float(np.sqrt(6.0 / (FEATURE_DIM + CLASS_NUM)))
    head_w = jax.random.uniform(
        k_w, (FEATURE_DIM, CLASS_NUM), minval=-limit, maxval=limit,
        dtype=jnp.float32)
    head_b = jnp.zeros((1, CLASS_NUM), dtype=jnp.float32)

    outs = learner_forward(feat_hr, feat_lr1, feat_lr2, feat_lr3, target,
                           head_w, head_b, bs=BS, lambda_dist=LAMBDA_DIST)
    outs = jax.block_until_ready(outs)
    got = np.array([float(o) for o in outs])

    want = np.array(reference_forward(
        [feat_hr, feat_lr1, feat_lr2, feat_lr3], target, head_w, head_b,
        BS, LAMBDA_DIST))

    assert np.all(np.isfinite(got)), got
    # Tolerance widened vs the f32 version because both matmuls now use bf16
    # MXU operands (f32 accumulation); reference is float64.
    np.testing.assert_allclose(got, want, rtol=1e-2, atol=1e-2)
    print("KERNEL_OK")
</pallas_src>

<mosaic_0001>
module attributes {stable_mosaic.version = 11 : i64} {
  func.func @fused_learner_kernel(%arg0: memref<8x1xi32, #tpu.memory_space<vmem>>, %arg1: memref<32x128xf32, #tpu.memory_space<vmem>>, %arg2: memref<128x128xbf16, #tpu.memory_space<any>>, %arg3: memref<1x128xf32, #tpu.memory_space<vmem>>, %arg4: memref<1x128xf32, #tpu.memory_space<vmem>>, %arg5: memref<128x128xbf16, #tpu.memory_space<vmem>>, %arg6: memref<!tpu.dma_semaphore, #tpu.memory_space<semaphore_mem>>) attributes {dimension_semantics = [], scalar_prefetch = 0 : i64, scratch_operands = 2 : i64, tpu.core_type = #tpu.core_type<tc>} {
    tpu.enqueue_dma source(%arg2 : memref<128x128xbf16, #tpu.memory_space<any>>) target(%arg5 : memref<128x128xbf16, #tpu.memory_space<vmem>>) target_semaphore(%arg6 : memref<!tpu.dma_semaphore, #tpu.memory_space<semaphore_mem>>)
    %c0 = arith.constant 0 : index
    %c0_0 = arith.constant 0 : index
    %0 = vector.load %arg1[%c0, %c0_0] : memref<32x128xf32, #tpu.memory_space<vmem>>, vector<32x128xf32>
    %1 = arith.truncf %0 : vector<32x128xf32> to vector<32x128xbf16>
    %cst = arith.constant dense<0.000000e+00> : vector<32x32xf32>
    %2 = tpu.matmul %1, %1, %cst {dimension_numbers = #tpu.dot_dimension_numbers<[1], [1], [0], [0], [0, 0, 1, 0], [], []>} : vector<32x128xbf16>, vector<32x128xbf16>, vector<32x32xf32> -> vector<32x32xf32>
    %3 = tpu.iota {dimensions = array<i32: 0>} : vector<32x32xi32>
    %4 = tpu.iota {dimensions = array<i32: 1>} : vector<32x32xi32>
    %5 = arith.cmpi eq, %3, %4 : vector<32x32xi32>
    %cst_1 = arith.constant 0.000000e+00 : f32
    %6 = vector.broadcast %cst_1 : f32 to vector<32x32xf32>
    %7 = arith.select %5, %2, %6 : vector<32x32xi1>, vector<32x32xf32>
    %cst_2 = arith.constant dense<0.000000e+00> : vector<32xf32>
    %8 = vector.multi_reduction <add>, %7, %cst_2 [1] : vector<32x32xf32> to vector<32xf32>
    %9 = vector.shape_cast %8 : vector<32xf32> to vector<32x1xf32>
    %cst_3 = arith.constant dense<0.000000e+00> : vector<32xf32>
    %10 = vector.multi_reduction <add>, %7, %cst_3 [0] : vector<32x32xf32> to vector<32xf32>
    %11 = vector.shape_cast %10 : vector<32xf32> to vector<1x32xf32>
    %cst_4 = arith.constant 1.000000e-16 : f32
    %12 = vector.broadcast %cst_4 : f32 to vector<32x1xf32>
    %13 = arith.maximumf %9, %12 : vector<32x1xf32>
    %14 = math.rsqrt %13 : vector<32x1xf32>
    %cst_5 = arith.constant 1.000000e-16 : f32
    %15 = vector.broadcast %cst_5 : f32 to vector<1x32xf32>
    %16 = arith.maximumf %11, %15 : vector<1x32xf32>
    %17 = math.rsqrt %16 : vector<1x32xf32>
    %18 = vector.broadcast %14 : vector<32x1xf32> to vector<32x32xf32>
    %19 = arith.mulf %2, %18 : vector<32x32xf32>
    %20 = vector.broadcast %17 : vector<1x32xf32> to vector<32x32xf32>
    %21 = arith.mulf %19, %20 : vector<32x32xf32>
    %22 = arith.subi %3, %4 : vector<32x32xi32>
    %c7_i32 = arith.constant 7 : i32
    %23 = vector.broadcast %c7_i32 : i32 to vector<32x32xi32>
    %24 = arith.andi %22, %23 : vector<32x32xi32>
    %c0_i32 = arith.constant 0 : i32
    %25 = vector.broadcast %c0_i32 : i32 to vector<32x32xi32>
    %26 = arith.cmpi eq, %24, %25 : vector<32x32xi32>
    %cst_6 = arith.constant dense<true> : vector<32x32xi1>
    %27 = arith.xori %5, %cst_6 : vector<32x32xi1>
    %28 = arith.andi %26, %27 : vector<32x32xi1>
    %cst_7 = arith.constant dense<true> : vector<32x32xi1>
    %29 = arith.xori %26, %cst_7 : vector<32x32xi1>
    %cst_8 = arith.constant 1.000000e+30 : f32
    %30 = vector.broadcast %cst_8 : f32 to vector<32x32xf32>
    %31 = arith.select %28, %21, %30 : vector<32x32xi1>, vector<32x32xf32>
    %cst_9 = arith.constant dense<0x7F800000> : vector<32xf32>
    %32 = vector.multi_reduction <minimumf>, %31, %cst_9 [1] : vector<32x32xf32> to vector<32xf32>
    %33 = vector.shape_cast %32 : vector<32xf32> to vector<32x1xf32>
    %cst_10 = arith.constant -1.000000e+30 : f32
    %34 = vector.broadcast %cst_10 : f32 to vector<32x32xf32>
    %35 = arith.select %29, %21, %34 : vector<32x32xi1>, vector<32x32xf32>
    %cst_11 = arith.constant dense<0xFF800000> : vector<32xf32>
    %36 = vector.multi_reduction <maximumf>, %35, %cst_11 [1] : vector<32x32xf32> to vector<32xf32>
    %37 = vector.shape_cast %36 : vector<32xf32> to vector<32x1xf32>
    %cst_12 = arith.constant 1.000000e+00 : f32
    %38 = vector.broadcast %cst_12 : f32 to vector<32x1xf32>
    %39 = arith.addf %38, %37 : vector<32x1xf32>
    %40 = arith.subf %39, %33 : vector<32x1xf32>
    %cst_13 = arith.constant 0.000000e+00 : f32
    %41 = vector.broadcast %cst_13 : f32 to vector<32x1xf32>
    %42 = arith.maximumf %40, %41 : vector<32x1xf32>
    %cst_14 = arith.constant dense<0.000000e+00> : vector<1xf32>
    %43 = vector.multi_reduction <add>, %42, %cst_14 [0] : vector<32x1xf32> to vector<1xf32>
    %44 = vector.shape_cast %43 : vector<1xf32> to vector<1x1xf32>
    %cst_15 = arith.constant 3.125000e-02 : f32
    %45 = vector.broadcast %cst_15 : f32 to vector<1x1xf32>
    %46 = arith.mulf %44, %45 : vector<1x1xf32>
    tpu.wait_dma2 semaphore(%arg6 : memref<!tpu.dma_semaphore, #tpu.memory_space<semaphore_mem>>) src(%arg2 : memref<128x128xbf16, #tpu.memory_space<any>>) dst(%arg5 : memref<128x128xbf16, #tpu.memory_space<vmem>>)
    %c0_16 = arith.constant 0 : index
    %c0_17 = arith.constant 0 : index
    %47 = vector.load %arg5[%c0_16, %c0_17] : memref<128x128xbf16, #tpu.memory_space<vmem>>, vector<128x128xbf16>
    %cst_18 = arith.constant dense<0.000000e+00> : vector<32x128xf32>
    %48 = tpu.matmul %1, %47, %cst_18 {dimension_numbers = #tpu.dot_dimension_numbers<[1], [0], [0], [1], [0, 0, 1, 1], [], []>} : vector<32x128xbf16>, vector<128x128xbf16>, vector<32x128xf32> -> vector<32x128xf32>
    %c0_19 = arith.constant 0 : index
    %c0_20 = arith.constant 0 : index
    %49 = vector.load %arg3[%c0_19, %c0_20] : memref<1x128xf32, #tpu.memory_space<vmem>>, vector<1x128xf32>
    %50 = vector.broadcast %49 : vector<1x128xf32> to vector<32x128xf32>
    %51 = arith.addf %48, %50 : vector<32x128xf32>
    %cst_21 = arith.constant dense<0xFF800000> : vector<32xf32>
    %52 = vector.multi_reduction <maximumf>, %51, %cst_21 [1] : vector<32x128xf32> to vector<32xf32>
    %53 = vector.shape_cast %52 : vector<32xf32> to vector<32x1xf32>
    %54 = vector.broadcast %53 : vector<32x1xf32> to vector<32x128xf32>
    %55 = arith.subf %51, %54 : vector<32x128xf32>
    %56 = math.exp %55 : vector<32x128xf32>
    %cst_22 = arith.constant dense<0.000000e+00> : vector<32xf32>
    %57 = vector.multi_reduction <add>, %56, %cst_22 [1] : vector<32x128xf32> to vector<32xf32>
    %58 = vector.shape_cast %57 : vector<32xf32> to vector<32x1xf32>
    %59 = math.log %58 : vector<32x1xf32>
    %60 = arith.addf %53, %59 : vector<32x1xf32>
    %c0_23 = arith.constant 0 : index
    %c0_24 = arith.constant 0 : index
    %61 = vector.load %arg0[%c0_23, %c0_24] : memref<8x1xi32, #tpu.memory_space<vmem>>, vector<8x1xi32>
    %62 = tpu.concatenate %61, %61, %61, %61 in 0 : vector<8x1xi32>, vector<8x1xi32>, vector<8x1xi32>, vector<8x1xi32> -> vector<32x1xi32>
    %63 = tpu.iota {dimensions = array<i32: 1>} : vector<32x128xi32>
    %64 = vector.broadcast %62 : vector<32x1xi32> to vector<32x128xi32>
    %65 = arith.cmpi eq, %63, %64 : vector<32x128xi32>
    %cst_25 = arith.constant 0.000000e+00 : f32
    %66 = vector.broadcast %cst_25 : f32 to vector<32x128xf32>
    %67 = arith.select %65, %51, %66 : vector<32x128xi1>, vector<32x128xf32>
    %cst_26 = arith.constant dense<0.000000e+00> : vector<32xf32>
    %68 = vector.multi_reduction <add>, %67, %cst_26 [1] : vector<32x128xf32> to vector<32xf32>
    %69 = vector.shape_cast %68 : vector<32xf32> to vector<32x1xf32>
    %70 = arith.subf %60, %69 : vector<32x1xf32>
    %71 = vector.extract_strided_slice %70 {offsets = [0, 0], sizes = [8, 1], strides = [1, 1]} : vector<32x1xf32> to vector<8x1xf32>
    %cst_27 = arith.constant dense<0.000000e+00> : vector<1xf32>
    %72 = vector.multi_reduction <add>, %71, %cst_27 [0] : vector<8x1xf32> to vector<1xf32>
    %73 = vector.shape_cast %72 : vector<1xf32> to vector<1x1xf32>
    %cst_28 = arith.constant 1.250000e-01 : f32
    %74 = vector.broadcast %cst_28 : f32 to vector<1x1xf32>
    %75 = arith.mulf %73, %74 : vector<1x1xf32>
    %76 = vector.extract_strided_slice %70 {offsets = [8, 0], sizes = [8, 1], strides = [1, 1]} : vector<32x1xf32> to vector<8x1xf32>
    %cst_29 = arith.constant dense<0.000000e+00> : vector<1xf32>
    %77 = vector.multi_reduction <add>, %76, %cst_29 [0] : vector<8x1xf32> to vector<1xf32>
    %78 = vector.shape_cast %77 : vector<1xf32> to vector<1x1xf32>
    %cst_30 = arith.constant 1.250000e-01 : f32
    %79 = vector.broadcast %cst_30 : f32 to vector<1x1xf32>
    %80 = arith.mulf %78, %79 : vector<1x1xf32>
    %81 = vector.extract_strided_slice %70 {offsets = [16, 0], sizes = [8, 1], strides = [1, 1]} : vector<32x1xf32> to vector<8x1xf32>
    %cst_31 = arith.constant dense<0.000000e+00> : vector<1xf32>
    %82 = vector.multi_reduction <add>, %81, %cst_31 [0] : vector<8x1xf32> to vector<1xf32>
    %83 = vector.shape_cast %82 : vector<1xf32> to vector<1x1xf32>
    %cst_32 = arith.constant 1.250000e-01 : f32
    %84 = vector.broadcast %cst_32 : f32 to vector<1x1xf32>
    %85 = arith.mulf %83, %84 : vector<1x1xf32>
    %86 = vector.extract_strided_slice %70 {offsets = [24, 0], sizes = [8, 1], strides = [1, 1]} : vector<32x1xf32> to vector<8x1xf32>
    %cst_33 = arith.constant dense<0.000000e+00> : vector<1xf32>
    %87 = vector.multi_reduction <add>, %86, %cst_33 [0] : vector<8x1xf32> to vector<1xf32>
    %88 = vector.shape_cast %87 : vector<1xf32> to vector<1x1xf32>
    %cst_34 = arith.constant 1.250000e-01 : f32
    %89 = vector.broadcast %cst_34 : f32 to vector<1x1xf32>
    %90 = arith.mulf %88, %89 : vector<1x1xf32>
    %91 = arith.addf %75, %80 : vector<1x1xf32>
    %92 = arith.addf %91, %85 : vector<1x1xf32>
    %93 = arith.addf %92, %90 : vector<1x1xf32>
    %cst_35 = arith.constant 2.500000e-01 : f32
    %94 = vector.broadcast %cst_35 : f32 to vector<1x1xf32>
    %95 = arith.mulf %93, %94 : vector<1x1xf32>
    %cst_36 = arith.constant 1.000000e-01 : f32
    %96 = vector.broadcast %cst_36 : f32 to vector<1x1xf32>
    %97 = arith.mulf %96, %46 : vector<1x1xf32>
    %98 = arith.addf %95, %97 : vector<1x1xf32>
    %99 = tpu.iota {dimensions = array<i32: 1>} : vector<1x128xi32>
    %cst_37 = arith.constant 0.000000e+00 : f32
    %100 = vector.broadcast %cst_37 : f32 to vector<1x128xf32>
    %c0_i32_38 = arith.constant 0 : i32
    %101 = vector.broadcast %c0_i32_38 : i32 to vector<1x128xi32>
    %102 = arith.cmpi eq, %99, %101 : vector<1x128xi32>
    %103 = vector.shape_cast %98 : vector<1x1xf32> to vector<1x1xf32>
    %104 = vector.broadcast %103 : vector<1x1xf32> to vector<1x128xf32>
    %105 = arith.select %102, %104, %100 : vector<1x128xi1>, vector<1x128xf32>
    %c1_i32 = arith.constant 1 : i32
    %106 = vector.broadcast %c1_i32 : i32 to vector<1x128xi32>
    %107 = arith.cmpi eq, %99, %106 : vector<1x128xi32>
    %108 = vector.shape_cast %75 : vector<1x1xf32> to vector<1x1xf32>
    %109 = vector.broadcast %108 : vector<1x1xf32> to vector<1x128xf32>
    %110 = arith.select %107, %109, %105 : vector<1x128xi1>, vector<1x128xf32>
    %c2_i32 = arith.constant 2 : i32
    %111 = vector.broadcast %c2_i32 : i32 to vector<1x128xi32>
    %112 = arith.cmpi eq, %99, %111 : vector<1x128xi32>
    %113 = vector.shape_cast %80 : vector<1x1xf32> to vector<1x1xf32>
    %114 = vector.broadcast %113 : vector<1x1xf32> to vector<1x128xf32>
    %115 = arith.select %112, %114, %110 : vector<1x128xi1>, vector<1x128xf32>
    %c3_i32 = arith.constant 3 : i32
    %116 = vector.broadcast %c3_i32 : i32 to vector<1x128xi32>
    %117 = arith.cmpi eq, %99, %116 : vector<1x128xi32>
    %118 = vector.shape_cast %85 : vector<1x1xf32> to vector<1x1xf32>
    %119 = vector.broadcast %118 : vector<1x1xf32> to vector<1x128xf32>
    %120 = arith.select %117, %119, %115 : vector<1x128xi1>, vector<1x128xf32>
    %c4_i32 = arith.constant 4 : i32
    %121 = vector.broadcast %c4_i32 : i32 to vector<1x128xi32>
    %122 = arith.cmpi eq, %99, %121 : vector<1x128xi32>
    %123 = vector.shape_cast %90 : vector<1x1xf32> to vector<1x1xf32>
    %124 = vector.broadcast %123 : vector<1x1xf32> to vector<1x128xf32>
    %125 = arith.select %122, %124, %120 : vector<1x128xi1>, vector<1x128xf32>
    %c5_i32 = arith.constant 5 : i32
    %126 = vector.broadcast %c5_i32 : i32 to vector<1x128xi32>
    %127 = arith.cmpi eq, %99, %126 : vector<1x128xi32>
    %128 = vector.shape_cast %46 : vector<1x1xf32> to vector<1x1xf32>
    %129 = vector.broadcast %128 : vector<1x1xf32> to vector<1x128xf32>
    %130 = arith.select %127, %129, %125 : vector<1x128xi1>, vector<1x128xf32>
    %c0_39 = arith.constant 0 : index
    %c0_40 = arith.constant 0 : index
    %131 = vector.load %arg4[%c0_39, %c0_40] : memref<1x128xf32, #tpu.memory_space<vmem>>, vector<1x128xf32>
    tpu.vector_store %arg4[%c0_39, %c0_40], %130 {strides = array<i32>} : memref<1x128xf32, #tpu.memory_space<vmem>>, vector<1x128xf32>,
    return
  }
}

</mosaic_0001>

<llo_original>
// kernel: learner_forward.1
$region0: #{learner_forward.1}
  #allocation0 [shape = 'u32[]', space=smem, size = 0x4, offset = 0x4, fixed_abs, tag = 'smem constant byte address 0x4 - core index']
  #allocation1 [shape = 'u32[144,128]{1,0:T(1,128)}', space=vmem, size = 0x12000, scoped, tag = 'internal scratch']
  #allocation2 [shape = 'bf16[128,128]{1,0:T(8,128)(2,1)}', space=vmem, size = 0x8000, scoped, tag = 'scratch operand']
  #allocation3 [shape = 's32[1]{0}', space=sflag, size = 0x4, scoped, tag = 'scratch operand']
  #allocation4 [shape = 's32[]', space=sflag, size = 0x4, offset = 0, fixed_abs, tag = 'sflag constant byte address 0x0 - dummy sync flag']
  %s0 = inlined_call_operand.vmem [shape: s32[8,1], index: 0, kind: input, shape index: {}]
  %s1 = inlined_call_operand.vmem [shape: f32[32,128], index: 1, kind: input, shape index: {}]
  %s2 = inlined_call_operand.vmem [shape: bf16[128,128], index: 2, kind: input, shape index: {}]
  %s3 = inlined_call_operand.vmem [shape: f32[1,128], index: 3, kind: input, shape index: {}]
  %s4 = inlined_call_operand.vmem [shape: f32[1,128], index: 4, kind: output, shape index: {}]
  %s5 = sld [smem:[#allocation0]]
  $region56: #{learner_forward.1} parent=0
    _
  %s7 = ssub.s32 1, %s5
  %s8 = scalar_select 0, %s7, %s5
  // Predicated region
  $region2: #{learner_forward.1} parent=0 // pred_check
    _
  $region3: #{learner_forward.1} parent=0 // pred_check_branch
    %10 = sbr.rel (0) target = $region5
  $region4: #{learner_forward.1} parent=0 // pred_region
    _
  $region5: #{learner_forward.1} parent=0 // pred_fallthru
    _
  // Predicated region
  $region6: #{learner_forward.1} parent=0 // pred_check
    _
  $region7: #{learner_forward.1} parent=0 // pred_check_branch
    %12 = sbr.rel (0) target = $region9
  $region8: #{learner_forward.1} parent=0 // pred_region
    _
  $region9: #{learner_forward.1} parent=0 // pred_fallthru
    _
  // Predicated region
  $region10: #{learner_forward.1} parent=0 // pred_check
    _
  $region11: #{learner_forward.1} parent=0 // pred_check_branch
    %14 = sbr.rel (0) target = $region13
  $region12: #{learner_forward.1} parent=0 // pred_region
    _
  $region13: #{learner_forward.1} parent=0 // pred_fallthru
    _
  %p17 = scmp.lt.u32.totalorder 64, 8
  %p18 = pneg %p17
  // Predicated region
  $region14: #{learner_forward.1} parent=0 // pred_check
    _
  $region15: #{learner_forward.1} parent=0 // pred_check_branch
    %20 = sbr.rel (%p17) target = $region17
  $region16: #{learner_forward.1} parent=0 // pred_region
    %s36 = sand.u32 64, 7
    %p37 = scmp.eq.s32.totalorder %s36, 0
    // Predicated region
    $region29: #{learner_forward.1} parent=16 // pred_check
      %p38 = pneg %p37
    $region30: #{learner_forward.1} parent=16 // pred_check_branch
      %40 = sbr.rel (%p38) target = $region32
    $region31: #{learner_forward.1} parent=16 // pred_region
      loop: start=0, step=1, limit=1
      $region33: #{learner_forward.1} parent=31 // loop_pre_header
        _
      $region34: #{learner_forward.1} parent=31 // loop_header
        %s42 = sphi 0, %s46
        %p43 = scmp.ge.s32.totalorder %s42, 1
        %s47 = sphi %s2, %s2
        %s48 = sphi [#allocation2], [#allocation2]
      $region35: #{learner_forward.1} parent=31 // loop_header_branch
        %45 = sbr.rel (%p43) target = $region39
      $region36: #{learner_forward.1} parent=31 // loop_body
        %v49 = vld [vmem:[%s47] sm:$0xff]
        %50 = vst [vmem:[%s48] sm:$0xff] %v49
        %v51 = vld [vmem:[%s47 + $0x8] sm:$0xff]
        %52 = vst [vmem:[%s48 + $0x8] sm:$0xff] %v51
        %v53 = vld [vmem:[%s47 + $0x10] sm:$0xff]
        %54 = vst [vmem:[%s48 + $0x10] sm:$0xff] %v53
        %v55 = vld [vmem:[%s47 + $0x18] sm:$0xff]
        %56 = vst [vmem:[%s48 + $0x18] sm:$0xff] %v55
        %v57 = vld [vmem:[%s47 + $0x20] sm:$0xff]
        %58 = vst [vmem:[%s48 + $0x20] sm:$0xff] %v57
        %v59 = vld [vmem:[%s47 + $0x28] sm:$0xff]
        %60 = vst [vmem:[%s48 + $0x28] sm:$0xff] %v59
        %v61 = vld [vmem:[%s47 + $0x30] sm:$0xff]
        %62 = vst [vmem:[%s48 + $0x30] sm:$0xff] %v61
        %v63 = vld [vmem:[%s47 + $0x38] sm:$0xff]
        %64 = vst [vmem:[%s48 + $0x38] sm:$0xff] %v63
      $region37: #{learner_forward.1} parent=31 // loop_footer
        %s46 = sadd.s32 1, %s42
      $region38: #{learner_forward.1} parent=31 // loop_footer_branch
        %41 = sbr.rel target = $region34
      $region39: #{learner_forward.1} parent=31 // loop_exit
        _
    $region32: #{learner_forward.1} parent=16 // pred_fallthru
      _
    %p65 = pneg %p37
    // Predicated region
    $region40: #{learner_forward.1} parent=16 // pred_check
      _
    $region41: #{learner_forward.1} parent=16 // pred_check_branch
      %67 = sbr.rel (%p37) target = $region43
    $region42: #{learner_forward.1} parent=16 // pred_region
      %s68 = sand.u32 64, 7
    $region43: #{learner_forward.1} parent=16 // pred_fallthru
      _
  $region17: #{learner_forward.1} parent=0 // pred_fallthru
    _
  // Predicated region
  $region18: #{learner_forward.1} parent=0 // pred_check
    %p21 = pneg %p17
  $region19: #{learner_forward.1} parent=0 // pred_check_branch
    %23 = sbr.rel (%p21) target = $region21
  $region20: #{learner_forward.1} parent=0 // pred_region
    %s24 = sshll.u32 1, 64
    %s25 = ssub.s32 %s24, 1
    loop: start=0, step=1, limit=1
    $region22: #{learner_forward.1} parent=20 // loop_pre_header
      _
    $region23: #{learner_forward.1} parent=20 // loop_header
      %s27 = sphi 0, %s31
      %p28 = scmp.ge.s32.totalorder %s27, 1
      %s32 = sphi %s2, %s2
      %s33 = sphi [#allocation2], [#allocation2]
    $region24: #{learner_forward.1} parent=20 // loop_header_branch
      %30 = sbr.rel (%p28) target = $region28
    $region25: #{learner_forward.1} parent=20 // loop_body
      %v34 = vld [vmem:[%s32] sm:%s25]
      %35 = vst [vmem:[%s33] sm:%s25] %v34
    $region26: #{learner_forward.1} parent=20 // loop_footer
      %s31 = sadd.s32 1, %s27
    $region27: #{learner_forward.1} parent=20 // loop_footer_branch
      %26 = sbr.rel target = $region23
    $region28: #{learner_forward.1} parent=20 // loop_exit
      _
  $region21: #{learner_forward.1} parent=0 // pred_fallthru
    _
  // Predicated region
  $region44: #{learner_forward.1} parent=0 // pred_check
    _
  $region45: #{learner_forward.1} parent=0 // pred_check_branch
    %71 = sbr.rel (0) target = $region47
  $region46: #{learner_forward.1} parent=0 // pred_region
    %72 = vsyncadd [#allocation3], 1024
  $region47: #{learner_forward.1} parent=0 // pred_fallthru
    _
  %v73 = vld [vmem:[%s1] sm:$0xff]
  %v74 = vld [vmem:[%s1 + $0x8] sm:$0xff]
  %v75 = vld [vmem:[%s1 + $0x10] sm:$0xff]
  %v76 = vld [vmem:[%s1 + $0x18] sm:$0xff]
  %v77 = vpack.c.bf16 %v74, %v73
  %v78 = vpack.c.bf16 %v76, %v75
  %79 = vmatprep.subr.bf16.mxu0 0
  %80 = vmatpush1.bf16.xpose.msra.mxu0 0
  %81 = vmatprep.subr.bf16.mxu0 0
  %82 = vmatpush1.bf16.xpose.msra.mxu0 0
  %83 = vmatprep.subr.bf16.mxu0 0
  %84 = vmatpush1.bf16.xpose.msra.mxu0 0
  %85 = vmatprep.subr.bf16.mxu0 0
  %86 = vmatpush1.bf16.xpose.msra.mxu0 0
  %87 = vmatprep.subr.bf16.mxu0 0
  %88 = vmatpush1.bf16.xpose.msra.mxu0 0
  %89 = vmatprep.subr.bf16.mxu0 0
  %90 = vmatpush1.bf16.xpose.msra.mxu0 0
  %91 = vmatprep.subr.bf16.mxu0 0
  %92 = vmatpush1.bf16.xpose.msra.mxu0 %v78
  %93 = vmatprep.subr.bf16.mxu0 0
  %94 = vmatpush1.bf16.xpose.msra.mxu0 %v77
  %95 = vmatprep.subr.bf16.mxu0 0
  %96 = vmatpush2.bf16.xpose.msra.mxu0 0
  %97 = vmatprep.subr.bf16.mxu0 0
  %98 = vmatpush2.bf16.xpose.msra.mxu0 0
  %99 = vmatprep.subr.bf16.mxu0 0
  %100 = vmatpush2.bf16.xpose.msra.mxu0 0
  %101 = vmatprep.subr.bf16.mxu0 0
  %102 = vmatpush2.bf16.xpose.msra.mxu0 0
  %103 = vmatprep.subr.bf16.mxu0 0
  %104 = vmatpush2.bf16.xpose.msra.mxu0 0
  %105 = vmatprep.subr.bf16.mxu0 0
  %106 = vmatpush2.bf16.xpose.msra.mxu0 0
  %107 = vmatprep.subr.bf16.mxu0 0
  %108 = vmatpush2.bf16.xpose.msra.mxu0 0
  %109 = vmatprep.subr.bf16.mxu0 0
  %110 = vmatpush2.bf16.xpose.msra.mxu0 0
  %111 = vmatprep.mubr.bf16.mxu0 0
  %112 = vmatmul.mubr.bf16.gmra.mxu0 %v77
  %v113 = vpop.f32.mrf.mxu0
  %v114 = vadd.f32 0.0, %v113
  %v115 = vpop.f32.mrf.mxu0
  %v116 = vpop.f32.mrf.mxu0
  %v117 = vadd.f32 0.0, %v116
  %v118 = vpop.f32.mrf.mxu0
  %119 = vmatprep.mubr.bf16.mxu0 0
  %120 = vmatmul.mubr.bf16.gmra.mxu0 %v78
  %v121 = vpop.f32.mrf.mxu0
  %v122 = vadd.f32 0.0, %v121
  %v123 = vpop.f32.mrf.mxu0
  %v124 = vpop.f32.mrf.mxu0
  %v125 = vadd.f32 0.0, %v124
  %v126 = vpop.f32.mrf.mxu0
  %127 = vdwg.mxu0
  %v128 = vlaneseq
  %v129 = vshrl.u32 %v128, 7
  %v130 = vadd.s32 %v129, 8
  %v131 = vadd.s32 %v129, 16
  %v132 = vadd.s32 %v129, 24
  %v133 = vlaneseq
  %v134 = vand.u32 %v133, 127
  %vm135 = vcmp.eq.s32.totalorder %v129, %v134
  %vm136 = vcmp.eq.s32.totalorder %v130, %v134
  %vm137 = vcmp.eq.s32.totalorder %v131, %v134
  %vm138 = vcmp.eq.s32.totalorder %v132, %v134
  %v139 = vsel %vm135, %v114, 0.0
  %v140 = vsel %vm136, %v117, 0.0
  %v141 = vsel %vm137, %v122, 0.0
  %v142 = vsel %vm138, %v125, 0.0
  %vm143 = vcmask 261120
  %v144 = vsel %vm143, %v139, 0.0
  %145 = vadd.xlane.f32.xlu0 %v144
  %v146 = vpop.xlane.xlu0 %145
  %v147 = vsel %vm143, %v140, 0.0
  %148 = vadd.xlane.f32.xlu0 %v147
  %v149 = vpop.xlane.xlu0 %148
  %v150 = vsel %vm143, %v141, 0.0
  %151 = vadd.xlane.f32.xlu0 %v150
  %v152 = vpop.xlane.xlu0 %151
  %v153 = vsel %vm143, %v142, 0.0
  %154 = vadd.xlane.f32.xlu0 %v153
  %v155 = vpop.xlane.xlu0 %154
  %v156 = vadd.f32 %v144, %v147
  %v157 = vadd.f32 %v156, %v150
  %v158 = vadd.f32 %v157, %v153
  %v159 = vrot.slane %v158, 4
  %v160 = vadd.f32 %v158, %v159
  %v161 = vrot.slane %v160, 2
  %v162 = vadd.f32 %v160, %v161
  %v163 = vrot.slane %v162, 1
  %v164 = vadd.f32 %v162, %v163
  %v165 = vmax.f32 %v146, 1e-16
  %v166 = vmax.f32 %v149, 1e-16
  %v167 = vmax.f32 %v152, 1e-16
  %v168 = vmax.f32 %v155, 1e-16
  %v169 = vrsqrt.pop %v165
  %v170 = vrsqrt.pop %v166
  %v171 = vrsqrt.pop %v167
  %v172 = vrsqrt.pop %v168
  %v173 = vmax.f32 %v164, 1e-16
  %v174 = vrsqrt.pop %v173
  %v175 = vmul.f32 %v114, %v169
  %v176 = vmul.f32 %v117, %v170
  %v177 = vmul.f32 %v122, %v171
  %v178 = vmul.f32 %v125, %v172
  %v179 = vmul.f32 %v175, %v174
  %v180 = vmul.f32 %v176, %v174
  %v181 = vmul.f32 %v177, %v174
  %v182 = vmul.f32 %v178, %v174
  %v183 = vsub.s32 %v129, %v134
  %v184 = vsub.s32 %v130, %v134
  %v185 = vsub.s32 %v131, %v134
  %v186 = vsub.s32 %v132, %v134
  %v187 = vand.u32 %v183, 7
  %v188 = vand.u32 %v184, 7
  %v189 = vand.u32 %v185, 7
  %v190 = vand.u32 %v186, 7
  %vm191 = vcmp.eq.s32.totalorder %v187, 0
  %vm192 = vcmp.eq.s32.totalorder %v188, 0
  %vm193 = vcmp.eq.s32.totalorder %v189, 0
  %vm194 = vcmp.eq.s32.totalorder %v190, 0
  %vm195 = vmxor %vm135, 1
  %vm196 = vmxor %vm136, 1
  %vm197 = vmxor %vm137, 1
  %vm198 = vmxor %vm138, 1
  %vm199 = vmand %vm191, %vm195
  %vm200 = vmand %vm192, %vm196
  %vm201 = vmand %vm193, %vm197
  %vm202 = vmand %vm194, %vm198
  %vm203 = vmxor %vm191, 1
  %vm204 = vmxor %vm192, 1
  %vm205 = vmxor %vm193, 1
  %vm206 = vmxor %vm194, 1
  %v207 = vsel %vm199, %v179, 1e+30
  %v208 = vsel %vm200, %v180, 1e+30
  %v209 = vsel %vm201, %v181, 1e+30
  %v210 = vsel %vm202, %v182, 1e+30
  %v211 = vsel %vm143, %v207, inf
  %212 = vmin.xlane.f32.xlu0 %v211
  %v213 = vpop.xlane.xlu0 %212
  %v214 = vsel %vm143, %v208, inf
  %215 = vmin.xlane.f32.xlu0 %v214
  %v216 = vpop.xlane.xlu0 %215
  %v217 = vsel %vm143, %v209, inf
  %218 = vmin.xlane.f32.xlu0 %v217
  %v219 = vpop.xlane.xlu0 %218
  %v220 = vsel %vm143, %v210, inf
  %221 = vmin.xlane.f32.xlu0 %v220
  %v222 = vpop.xlane.xlu0 %221
  %v223 = vsel %vm203, %v179, -1e+30
  %v224 = vsel %vm204, %v180, -1e+30
  %v225 = vsel %vm205, %v181, -1e+30
  %v226 = vsel %vm206, %v182, -1e+30
  %v227 = vsel %vm143, %v223, -inf
  %228 = vmax.xlane.f32.xlu0 %v227
  %v229 = vpop.xlane.xlu0 %228
  %v230 = vsel %vm143, %v224, -inf
  %231 = vmax.xlane.f32.xlu0 %v230
  %v232 = vpop.xlane.xlu0 %231
  %v233 = vsel %vm143, %v225, -inf
  %234 = vmax.xlane.f32.xlu0 %v233
  %v235 = vpop.xlane.xlu0 %234
  %v236 = vsel %vm143, %v226, -inf
  %237 = vmax.xlane.f32.xlu0 %v236
  %v238 = vpop.xlane.xlu0 %237
  %v239 = vadd.f32 %v229, 1.0
  %v240 = vadd.f32 %v232, 1.0
  %v241 = vadd.f32 %v235, 1.0
  %v242 = vadd.f32 %v238, 1.0
  %v243 = vsub.f32 %v239, %v213
  %v244 = vsub.f32 %v240, %v216
  %v245 = vsub.f32 %v241, %v219
  %v246 = vsub.f32 %v242, %v222
  %v247 = vmax.f32 %v243, 0.0
  %v248 = vmax.f32 %v244, 0.0
  %v249 = vmax.f32 %v245, 0.0
  %v250 = vmax.f32 %v246, 0.0
  %v251 = vadd.f32 %v247, %v248
  %v252 = vadd.f32 %v251, %v249
  %v253 = vadd.f32 %v252, %v250
  %v254 = vrot.slane %v253, 4
  %v255 = vadd.f32 %v253, %v254
  %v256 = vrot.slane %v255, 2
  %v257 = vadd.f32 %v255, %v256
  %v258 = vrot.slane %v257, 1
  %v259 = vadd.f32 %v257, %v258
  %v260 = vmul.f32 %v259, 0.03125
  %s261 = smul.u32 4, 16
  %s262 = smul.u32 %s261, 1
  %s263 = sshll.u32 %s262, 4
  %264 = dma.done [#allocation3], %s263
  %v265 = vld [vmem:[#allocation2] sm:$0xf]
  %v266 = vld [vmem:[#allocation2 + $0x4] sm:$0xf]
  %v267 = vld [vmem:[#allocation2 + $0x8] sm:$0xf]
  %v268 = vld [vmem:[#allocation2 + $0xc] sm:$0xf]
  %v269 = vld [vmem:[#allocation2 + $0x10] sm:$0xf]
  %v270 = vld [vmem:[#allocation2 + $0x14] sm:$0xf]
  %v271 = vld [vmem:[#allocation2 + $0x18] sm:$0xf]
  %v272 = vld [vmem:[#allocation2 + $0x1c] sm:$0xf]
  %v273 = vld [vmem:[#allocation2 + $0x20] sm:$0xf]
  %v274 = vld [vmem:[#allocation2 + $0x24] sm:$0xf]
  %v275 = vld [vmem:[#allocation2 + $0x28] sm:$0xf]
  %v276 = vld [vmem:[#allocation2 + $0x2c] sm:$0xf]
  %v277 = vld [vmem:[#allocation2 + $0x30] sm:$0xf]
  %v278 = vld [vmem:[#allocation2 + $0x34] sm:$0xf]
  %v279 = vld [vmem:[#allocation2 + $0x38] sm:$0xf]
  %v280 = vld [vmem:[#allocation2 + $0x3c] sm:$0xf]
  %v281 = vld [vmem:[%s3] sm:$0x1]
  %v283 = vlaneseq
  %v284 = vshrl.u32 %v283, 7
  %v285 = vsub.s32 0, %v284
  %v286 = vrot.slane %v281, %v285
  %v304 = vunpack.c.l.b16 %v265
  %v305 = vunpack.c.l.b16 %v266
  %v306 = vunpack.c.l.b16 %v267
  %v307 = vunpack.c.l.b16 %v268
  %v308 = vunpack.c.l.b16 %v269
  %v309 = vunpack.c.l.b16 %v270
  %v310 = vunpack.c.l.b16 %v271
  %v311 = vunpack.c.l.b16 %v272
  %v312 = vunpack.c.l.b16 %v273
  %v313 = vunpack.c.l.b16 %v274
  %v314 = vunpack.c.l.b16 %v275
  %v315 = vunpack.c.l.b16 %v276
  %v316 = vunpack.c.l.b16 %v277
  %v317 = vunpack.c.l.b16 %v278
  %v318 = vunpack.c.l.b16 %v279
  %v319 = vunpack.c.l.b16 %v280
  %v320 = vpack.c.b16 %v305, %v304
  %v321 = vpack.c.b16 %v307, %v306
  %v322 = vpack.c.b16 %v309, %v308
  %v323 = vpack.c.b16 %v311, %v310
  %v324 = vpack.c.b16 %v313, %v312
  %v325 = vpack.c.b16 %v315, %v314
  %v326 = vpack.c.b16 %v317, %v316
  %v327 = vpack.c.b16 %v319, %v318
  %336 = vmatprep.subr.bf16.mxu0 0
  %337 = vmatpush1.bf16.msra.mxu0 %v327
  %338 = vmatprep.subr.bf16.mxu0 0
  %339 = vmatpush1.bf16.msra.mxu0 %v326
  %340 = vmatprep.subr.bf16.mxu0 0
  %341 = vmatpush1.bf16.msra.mxu0 %v325
  %342 = vmatprep.subr.bf16.mxu0 0
  %343 = vmatpush1.bf16.msra.mxu0 %v324
  %344 = vmatprep.subr.bf16.mxu0 0
  %345 = vmatpush1.bf16.msra.mxu0 %v323
  %346 = vmatprep.subr.bf16.mxu0 0
  %347 = vmatpush1.bf16.msra.mxu0 %v322
  %348 = vmatprep.subr.bf16.mxu0 0
  %349 = vmatpush1.bf16.msra.mxu0 %v321
  %350 = vmatprep.subr.bf16.mxu0 0
  %351 = vmatpush1.bf16.msra.mxu0 %v320
  %352 = vmatprep.subr.bf16.mxu0 0
  %353 = vmatpush2.bf16.msra.mxu0 0
  %354 = vmatprep.subr.bf16.mxu0 0
  %355 = vmatpush2.bf16.msra.mxu0 0
  %356 = vmatprep.subr.bf16.mxu0 0
  %357 = vmatpush2.bf16.msra.mxu0 0
  %358 = vmatprep.subr.bf16.mxu0 0
  %359 = vmatpush2.bf16.msra.mxu0 0
  %360 = vmatprep.subr.bf16.mxu0 0
  %361 = vmatpush2.bf16.msra.mxu0 0
  %362 = vmatprep.subr.bf16.mxu0 0
  %363 = vmatpush2.bf16.msra.mxu0 0
  %364 = vmatprep.subr.bf16.mxu0 0
  %365 = vmatpush2.bf16.msra.mxu0 0
  %366 = vmatprep.subr.bf16.mxu0 0
  %367 = vmatpush2.bf16.msra.mxu0 0
  %368 = vmatprep.mubr.bf16.mxu0 0
  %369 = vmatmul.mubr.bf16.gmra.mxu0 %v77
  %v370 = vpop.f32.mrf.mxu0
  %v371 = vadd.f32 %v286, %v370
  %v372 = vpop.f32.mrf.mxu0
  %v373 = vpop.f32.mrf.mxu0
  %v374 = vadd.f32 %v286, %v373
  %v375 = vpop.f32.mrf.mxu0
  %376 = vmatprep.mubr.bf16.mxu0 0
  %377 = vmatmul.mubr.bf16.gmra.mxu0 %v78
  %v378 = vpop.f32.mrf.mxu0
  %v379 = vadd.f32 %v286, %v378
  %v380 = vpop.f32.mrf.mxu0
  %v381 = vpop.f32.mrf.mxu0
  %v382 = vadd.f32 %v286, %v381
  %v383 = vpop.f32.mrf.mxu0
  %384 = vdwg.mxu0
  %385 = vmax.xlane.f32.xlu0 %v371
  %v386 = vpop.xlane.xlu0 %385
  %387 = vmax.xlane.f32.xlu0 %v374
  %v388 = vpop.xlane.xlu0 %387
  %389 = vmax.xlane.f32.xlu0 %v379
  %v390 = vpop.xlane.xlu0 %389
  %391 = vmax.xlane.f32.xlu0 %v382
  %v392 = vpop.xlane.xlu0 %391
  %v393 = vsub.f32 %v371, %v386
  %v394 = vsub.f32 %v374, %v388
  %v395 = vsub.f32 %v379, %v390
  %v396 = vsub.f32 %v382, %v392
  %v397 = vmul.f32 %v393, 1.442695
  %v398 = vpow.pop %v397
  %v399 = vmul.f32 %v394, 1.442695
  %v400 = vpow.pop %v399
  %v401 = vmul.f32 %v395, 1.442695
  %v402 = vpow.pop %v401
  %v403 = vmul.f32 %v396, 1.442695
  %v404 = vpow.pop %v403
  %405 = vadd.xlane.f32.xlu0 %v398
  %v406 = vpop.xlane.xlu0 %405
  %407 = vadd.xlane.f32.xlu0 %v400
  %v408 = vpop.xlane.xlu0 %407
  %409 = vadd.xlane.f32.xlu0 %v402
  %v410 = vpop.xlane.xlu0 %409
  %411 = vadd.xlane.f32.xlu0 %v404
  %v412 = vpop.xlane.xlu0 %411
  %v413 = vlog2.pop %v406
  %v414 = vmul.f32 %v413, 0.6931472
  %v415 = vlog2.pop %v408
  %v416 = vmul.f32 %v415, 0.6931472
  %v417 = vlog2.pop %v410
  %v418 = vmul.f32 %v417, 0.6931472
  %v419 = vlog2.pop %v412
  %v420 = vmul.f32 %v419, 0.6931472
  %v421 = vadd.f32 %v386, %v414
  %v422 = vadd.f32 %v388, %v416
  %v423 = vadd.f32 %v390, %v418
  %v424 = vadd.f32 %v392, %v420
  %v425 = vld [vmem:[%s0] sm:$0xff]
  %426 = vset.pattern.permute.xlu0 0
  %427 = vperm.xlu0 %426, %v425
  %v428 = vpop.permute.xlu0 %427
  %vm429 = vcmp.eq.s32.totalorder %v134, %v428
  %v430 = vsel %vm429, %v371, 0.0
  %v431 = vsel %vm429, %v374, 0.0
  %v432 = vsel %vm429, %v379, 0.0
  %v433 = vsel %vm429, %v382, 0.0
  %434 = vadd.xlane.f32.xlu0 %v430
  %v435 = vpop.xlane.xlu0 %434
  %436 = vadd.xlane.f32.xlu0 %v431
  %v437 = vpop.xlane.xlu0 %436
  %438 = vadd.xlane.f32.xlu0 %v432
  %v439 = vpop.xlane.xlu0 %438
  %440 = vadd.xlane.f32.xlu0 %v433
  %v441 = vpop.xlane.xlu0 %440
  %v442 = vsub.f32 %v421, %v435
  %v443 = vsub.f32 %v422, %v437
  %v444 = vsub.f32 %v423, %v439
  %v445 = vsub.f32 %v424, %v441
  %v446 = vrot.slane %v442, 4
  %v447 = vadd.f32 %v442, %v446
  %v448 = vrot.slane %v447, 2
  %v449 = vadd.f32 %v447, %v448
  %v450 = vrot.slane %v449, 1
  %v451 = vadd.f32 %v449, %v450
  %v452 = vmul.f32 %v451, 0.125
  %v453 = vrot.slane %v443, 4
  %v454 = vadd.f32 %v443, %v453
  %v455 = vrot.slane %v454, 2
  %v456 = vadd.f32 %v454, %v455
  %v457 = vrot.slane %v456, 1
  %v458 = vadd.f32 %v456, %v457
  %v459 = vmul.f32 %v458, 0.125
  %v460 = vrot.slane %v444, 4
  %v461 = vadd.f32 %v444, %v460
  %v462 = vrot.slane %v461, 2
  %v463 = vadd.f32 %v461, %v462
  %v464 = vrot.slane %v463, 1
  %v465 = vadd.f32 %v463, %v464
  %v466 = vmul.f32 %v465, 0.125
  %v467 = vrot.slane %v445, 4
  %v468 = vadd.f32 %v445, %v467
  %v469 = vrot.slane %v468, 2
  %v470 = vadd.f32 %v468, %v469
  %v471 = vrot.slane %v470, 1
  %v472 = vadd.f32 %v470, %v471
  %v473 = vmul.f32 %v472, 0.125
  %v474 = vadd.f32 %v452, %v459
  %v475 = vadd.f32 %v474, %v466
  %v476 = vadd.f32 %v475, %v473
  %v477 = vmul.f32 %v476, 0.25
  %v478 = vmul.f32 %v260, 0.1
  %v479 = vadd.f32 %v477, %v478
  %vm480 = vcmp.eq.s32.totalorder %v134, 0
  %v481 = vsel %vm480, %v479, 0.0
  %vm482 = vcmp.eq.s32.totalorder %v134, 1
  %v483 = vsel %vm482, %v452, %v481
  %vm484 = vcmp.eq.s32.totalorder %v134, 2
  %v485 = vsel %vm484, %v459, %v483
  %vm486 = vcmp.eq.s32.totalorder %v134, 3
  %v487 = vsel %vm486, %v466, %v485
  %vm488 = vcmp.eq.s32.totalorder %v134, 4
  %v489 = vsel %vm488, %v473, %v487
  %vm490 = vcmp.eq.s32.totalorder %v134, 5
  %v491 = vsel %vm490, %v260, %v489
  %492 = vst [vmem:[%s4] sm:$0x1] %v491
  // Predicated region
  $region48: #{learner_forward.1} parent=0 // pred_check
    _
  $region49: #{learner_forward.1} parent=0 // pred_check_branch
    %494 = sbr.rel (0) target = $region51
  $region50: #{learner_forward.1} parent=0 // pred_region
    _
  $region51: #{learner_forward.1} parent=0 // pred_fallthru
    _
  // Predicated region
  $region52: #{learner_forward.1} parent=0 // pred_check
    _
  $region53: #{learner_forward.1} parent=0 // pred_check_branch
    %496 = sbr.rel (0) target = $region55
  $region54: #{learner_forward.1} parent=0 // pred_region
    _
  $region55: #{learner_forward.1} parent=0 // pred_fallthru
    _
  %497 = vsyncmov [#allocation3]
  %s498 = vpop.sfrf %497
  %p499 = scmp.eq.s32.totalorder %s498, 0
  %p500 = pneg %p499
  %502 = shalt.err (%p500)

</llo_original>
